<compile_context>
chip_gen: v5e
topology: v5e:2x2
jax: 0.10.0
libtpu: 0.0.40
codegen_flags: <defaults>
</compile_context>

<pallas_src>
import functools

import jax
import jax.numpy as jnp
from jax.experimental import pallas as pl
from jax.experimental.pallas import tpu as pltpu


# ----------------------------- fused Pallas kernel ---------------------------


def fused_attn_kernel(x_ref, wqkv_ref, bqkv_ref, wo_ref, bo_ref, cs_ref,
                      k_cache_in_ref, v_cache_in_ref,       # HBM, aliased to outputs (unread)
                      y_ref, k_cache_out_ref, v_cache_out_ref,
                      k_rows_ref, v_rows_ref, dma_sem,      # scratch
                      *, n_heads, head_dim, cache_pos):
    del k_cache_in_ref, v_cache_in_ref  # same buffers as the *_out refs (aliased)
    T = x_ref.shape[0]
    dim = n_heads * head_dim
    half = head_dim // 2
    HT = n_heads * T

    # ---- fused QKV projection: one MXU matmul, one bias add ----
    x = x_ref[...]
    qkv = jnp.dot(x, wqkv_ref[...], preferred_element_type=jnp.float32) + bqkv_ref[...]
    q = qkv[:, 0 * dim:1 * dim]
    k = qkv[:, 1 * dim:2 * dim]
    v = qkv[:, 2 * dim:3 * dim]

    # ---- O(T) in-place KV-cache writeback (pre-RoPE k/v, exactly like the reference
    #      buffers); the row DMAs overlap with all of the attention compute below ----
    k_rows_ref[...] = k
    v_rows_ref[...] = v
    k_copy = pltpu.make_async_copy(
        k_rows_ref, k_cache_out_ref.at[pl.ds(cache_pos, T)], dma_sem.at[0])
    v_copy = pltpu.make_async_copy(
        v_rows_ref, v_cache_out_ref.at[pl.ds(cache_pos, T)], dma_sem.at[1])
    k_copy.start()
    v_copy.start()

    # ---- stack heads along sublanes: row h*T + t holds head h of token t ----
    def stack_heads(z):
        return jnp.concatenate(
            [z[:, h * head_dim:(h + 1) * head_dim] for h in range(n_heads)], axis=0)

    qg = stack_heads(q)                       # (H*T, hd)
    kg = stack_heads(k)
    vg = stack_heads(v)

    # ---- RoPE, applied once on the stacked tensors.
    #      cs rows: [cos, sin, cos*scale, sin*scale]; the 1/sqrt(hd) score scale is
    #      folded into q's cos/sin (a scalar commutes with the q.k contraction). ----
    cs = cs_ref[...]

    def rope(z, c, s):
        z_rot = jnp.concatenate([-z[:, half:], z[:, :half]], axis=1)
        return z * c + z_rot * s

    qg = rope(qg, cs[2:3, :], cs[3:4, :])
    kg = rope(kg, cs[0:1, :], cs[1:2, :])

    # ---- per-position heads x heads attention on the MXU (exact reference semantics) ----
    # s[i, j] = <qg[i], kg[j]> with i = h*T + t, j = g*T + t'; only t == t' is valid.
    s = jnp.einsum('id,jd->ij', qg, kg, preferred_element_type=jnp.float32)   # (H*T, H*T)
    row = jax.lax.broadcasted_iota(jnp.int32, (HT, HT), 0)
    col = jax.lax.broadcasted_iota(jnp.int32, (HT, HT), 1)
    if T & (T - 1) == 0:
        same_pos = (row & (T - 1)) == (col & (T - 1))
    else:
        same_pos = (row % T) == (col % T)
    s = jnp.where(same_pos, s, -1e30)
    s = s - jnp.max(s, axis=1, keepdims=True)
    p = jnp.exp(s)
    p = p * pl.reciprocal(jnp.sum(p, axis=1, keepdims=True), approx=True)
    og = jnp.dot(p, vg, preferred_element_type=jnp.float32)                   # (H*T, hd), rows h*T+t

    # ---- reference `.transpose(1,2).contiguous().view(B, T, dim)` reassembly ----
    # o_flat[r, g*hd + d] = og[r*H + g, d]  (faithful to the reference's row scramble).
    # Implemented as H one-hot selection matmuls + one lane concat (MXU gather),
    # avoiding an in-kernel relayout reshape and the old 32 single-row slices.
    r_ids = jax.lax.broadcasted_iota(jnp.int32, (T, HT), 0)
    c_ids = jax.lax.broadcasted_iota(jnp.int32, (T, HT), 1)
    sel_base = c_ids - r_ids * n_heads
    o_flat = jnp.concatenate(
        [jnp.dot((sel_base == g).astype(jnp.float32), og,
                 preferred_element_type=jnp.float32) for g in range(n_heads)],
        axis=1)                                                               # (T, dim)

    # ---- output projection ----
    y_ref[...] = (jnp.dot(o_flat, wo_ref[...], preferred_element_type=jnp.float32)
                  + bo_ref[...]).astype(y_ref.dtype)

    # Cache DMAs must complete before the kernel returns (hidden behind the compute above).
    k_copy.wait()
    v_copy.wait()


# --------------------------------- wrapper -----------------------------------


def attention_with_cache_forward(params, x, pos, k_cache, v_cache, *,
                                 n_heads, cache_pos=0):
    """Returns (output (B,T,dim), new_k_cache, new_v_cache)."""
    B, T, dim = x.shape
    head_dim = dim // n_heads
    max_seq_len = k_cache.shape[0]
    # The reference module only type-checks for B == 1 and cache_pos == 0 (S == T).
    assert B == 1 and cache_pos == 0

    scale = 1.0 / (head_dim ** 0.5)
    # RoPE tables: (4, head_dim) = [cos, sin, cos*scale, sin*scale] (scale folded into q).
    freq = 1.0 / (10000.0 ** (jnp.arange(0, head_dim, 2, dtype=jnp.float32) / head_dim))
    ang = pos * freq
    cos = jnp.concatenate([jnp.cos(ang), jnp.cos(ang)])[None, :]   # (1, head_dim)
    sin = jnp.concatenate([jnp.sin(ang), jnp.sin(ang)])[None, :]
    cs = jnp.concatenate([cos, sin, cos * scale, sin * scale], axis=0)

    # Fused QKV weights/bias (free wrapper-side prep, hoisted out of the kernel).
    wqkv = jnp.concatenate([params['wq'], params['wk'], params['wv']], axis=1)  # (dim, 3*dim)
    bqkv = jnp.concatenate([params['bq'], params['bk'], params['bv']], axis=1)  # (1, 3*dim)

    x2 = x[0]                                                      # (T, dim)
    # Row-major identical 2-D view of the caches (free reshape; restored on return).
    kc2 = k_cache.reshape(max_seq_len, dim)
    vc2 = v_cache.reshape(max_seq_len, dim)

    vmem = pl.BlockSpec(memory_space=pltpu.MemorySpace.VMEM)
    hbm = pl.BlockSpec(memory_space=pl.ANY)

    kernel = functools.partial(fused_attn_kernel, n_heads=n_heads,
                               head_dim=head_dim, cache_pos=cache_pos)

    y, kc_new, vc_new = pl.pallas_call(
        kernel,
        out_shape=(jax.ShapeDtypeStruct((T, dim), jnp.float32),
                   jax.ShapeDtypeStruct((max_seq_len, dim), jnp.float32),
                   jax.ShapeDtypeStruct((max_seq_len, dim), jnp.float32)),
        in_specs=[vmem] * 6 + [hbm, hbm],
        out_specs=(vmem, hbm, hbm),
        scratch_shapes=[pltpu.VMEM((T, dim), jnp.float32),
                        pltpu.VMEM((T, dim), jnp.float32),
                        pltpu.SemaphoreType.DMA((2,))],
        # Caches are updated in place: input 6 -> output 1, input 7 -> output 2.
        # (In a real decode loop the caller should also donate the cache buffers.)
        input_output_aliases={6: 1, 7: 2},
    )(x2, wqkv, bqkv, params['wo'], params['bo'], cs, kc2, vc2)

    return (y[None],
            kc_new.reshape(max_seq_len, n_heads, head_dim),
            vc_new.reshape(max_seq_len, n_heads, head_dim))


attention_fwd = jax.jit(attention_with_cache_forward,
                        static_argnames=("n_heads", "cache_pos"))


# -------------------------- pure-JAX reference -------------------------------


def reference_forward(params, x, pos, k_cache, v_cache, *, n_heads, cache_pos=0):
    B, T, dim = x.shape
    H = n_heads
    hd = dim // H
    q = (x @ params['wq'] + params['bq']).reshape(B, T, H, hd)
    k = (x @ params['wk'] + params['bk']).reshape(B, T, H, hd)
    v = (x @ params['wv'] + params['bv']).reshape(B, T, H, hd)
    k_cache = k_cache.at[cache_pos:cache_pos + T].set(k[0])
    v_cache = v_cache.at[cache_pos:cache_pos + T].set(v[0])

    freq = 1.0 / (10000.0 ** (jnp.arange(0, hd, 2, dtype=jnp.float32) / hd))
    ang = pos * freq
    cos = jnp.concatenate([jnp.cos(ang), jnp.cos(ang)])
    sin = jnp.concatenate([jnp.sin(ang), jnp.sin(ang)])

    def rot_half(z):
        z1, z2 = jnp.split(z, 2, axis=-1)
        return jnp.concatenate([-z2, z1], axis=-1)

    S = cache_pos + T
    k_all = k_cache[:S]                                # (S, H, hd)
    q_rot = q * cos + rot_half(q) * sin
    k_rot = k_all * cos + rot_half(k_all) * sin
    attn = jnp.einsum('bthd,tgd->bthg', q_rot, k_rot) * (1.0 / hd ** 0.5)
    attn = jax.nn.softmax(attn, axis=-1)
    out = jnp.einsum('bthg,tgd->bthd', attn, v_cache[:S])
    out = jnp.transpose(out, (0, 2, 1, 3)).reshape(B, T, dim)
    return out @ params['wo'] + params['bo'], k_cache, v_cache


# --------------------------------- main ---------------------------------------


if __name__ == "__main__":
    B, T, dim, n_heads, max_seq_len = 1, 8, 32, 4, 16
    head_dim = dim // n_heads

    key = jax.random.PRNGKey(0)
    keys = jax.random.split(key, 10)

    def w(k):  # (dim, dim), stored transposed so y = x @ w + b
        return 0.05 * jax.random.normal(k, (dim, dim), jnp.float32)

    def b(k):
        return 0.05 * jax.random.normal(k, (1, dim), jnp.float32)

    params = {
        'wq': w(keys[0]), 'bq': b(keys[1]),
        'wk': w(keys[2]), 'bk': b(keys[3]),
        'wv': w(keys[4]), 'bv': b(keys[5]),
        'wo': w(keys[6]), 'bo': b(keys[7]),
    }

    x = jax.random.normal(keys[8], (B, T, dim), jnp.float32)
    pos = jnp.float32(3.0)
    k_cache = jnp.zeros((max_seq_len, n_heads, head_dim), jnp.float32)
    v_cache = jnp.zeros((max_seq_len, n_heads, head_dim), jnp.float32)

    out, kc_new, vc_new = attention_fwd(
        params, x, pos, k_cache, v_cache, n_heads=n_heads, cache_pos=0)
    jax.block_until_ready((out, kc_new, vc_new))

    ref_out, ref_kc, ref_vc = reference_forward(
        params, x, pos, k_cache, v_cache, n_heads=n_heads, cache_pos=0)

    assert out.shape == (B, T, dim)
    assert jnp.allclose(out, ref_out, atol=1e-2, rtol=1e-2)
    assert jnp.allclose(kc_new, ref_kc, atol=1e-2, rtol=1e-2)
    assert jnp.allclose(vc_new, ref_vc, atol=1e-2, rtol=1e-2)

    print("KERNEL_OK")
</pallas_src>

<mosaic_0001>
module attributes {stable_mosaic.version = 11 : i64} {
  func.func @fused_attn_kernel(%arg0: memref<8x32xf32, #tpu.memory_space<vmem>>, %arg1: memref<32x96xf32, #tpu.memory_space<vmem>>, %arg2: memref<1x96xf32, #tpu.memory_space<vmem>>, %arg3: memref<32x32xf32, #tpu.memory_space<vmem>>, %arg4: memref<1x32xf32, #tpu.memory_space<vmem>>, %arg5: memref<4x8xf32, #tpu.memory_space<vmem>>, %arg6: memref<16x32xf32, #tpu.memory_space<any>>, %arg7: memref<16x32xf32, #tpu.memory_space<any>>, %arg8: memref<8x32xf32, #tpu.memory_space<vmem>>, %arg9: memref<16x32xf32, #tpu.memory_space<any>>, %arg10: memref<16x32xf32, #tpu.memory_space<any>>, %arg11: memref<8x32xf32, #tpu.memory_space<vmem>>, %arg12: memref<8x32xf32, #tpu.memory_space<vmem>>, %arg13: memref<2x!tpu.dma_semaphore, #tpu.memory_space<semaphore_mem>>) attributes {dimension_semantics = [], scalar_prefetch = 0 : i64, scratch_operands = 3 : i64, tpu.core_type = #tpu.core_type<tc>} {
    %c0 = arith.constant 0 : index
    %c0_0 = arith.constant 0 : index
    %0 = vector.load %arg0[%c0, %c0_0] : memref<8x32xf32, #tpu.memory_space<vmem>>, vector<8x32xf32>
    %c0_1 = arith.constant 0 : index
    %c0_2 = arith.constant 0 : index
    %1 = vector.load %arg1[%c0_1, %c0_2] : memref<32x96xf32, #tpu.memory_space<vmem>>, vector<32x96xf32>
    %cst = arith.constant dense<0.000000e+00> : vector<8x96xf32>
    %2 = tpu.matmul %0, %1, %cst {dimension_numbers = #tpu.dot_dimension_numbers<[1], [0], [0], [1], [0, 0, 1, 1], [], []>} : vector<8x32xf32>, vector<32x96xf32>, vector<8x96xf32> -> vector<8x96xf32>
    %c0_3 = arith.constant 0 : index
    %c0_4 = arith.constant 0 : index
    %3 = vector.load %arg2[%c0_3, %c0_4] : memref<1x96xf32, #tpu.memory_space<vmem>>, vector<1x96xf32>
    %4 = vector.broadcast %3 : vector<1x96xf32> to vector<8x96xf32>
    %5 = arith.addf %2, %4 : vector<8x96xf32>
    %6 = vector.extract_strided_slice %5 {offsets = [0, 0], sizes = [8, 32], strides = [1, 1]} : vector<8x96xf32> to vector<8x32xf32>
    %7 = vector.extract_strided_slice %5 {offsets = [0, 32], sizes = [8, 32], strides = [1, 1]} : vector<8x96xf32> to vector<8x32xf32>
    %8 = vector.extract_strided_slice %5 {offsets = [0, 64], sizes = [8, 32], strides = [1, 1]} : vector<8x96xf32> to vector<8x32xf32>
    %c0_5 = arith.constant 0 : index
    %c0_6 = arith.constant 0 : index
    %9 = vector.load %arg11[%c0_5, %c0_6] : memref<8x32xf32, #tpu.memory_space<vmem>>, vector<8x32xf32>
    tpu.vector_store %arg11[%c0_5, %c0_6], %7 {strides = array<i32>} : memref<8x32xf32, #tpu.memory_space<vmem>>, vector<8x32xf32>,
    %c0_7 = arith.constant 0 : index
    %c0_8 = arith.constant 0 : index
    %10 = vector.load %arg12[%c0_7, %c0_8] : memref<8x32xf32, #tpu.memory_space<vmem>>, vector<8x32xf32>
    tpu.vector_store %arg12[%c0_7, %c0_8], %8 {strides = array<i32>} : memref<8x32xf32, #tpu.memory_space<vmem>>, vector<8x32xf32>,
    %c0_i32 = arith.constant 0 : i32
    %c0_i32_9 = arith.constant 0 : i32
    %c0_i32_10 = arith.constant 0 : i32
    %11 = tpu.memref_slice %arg9[%c0_i32_9, %c0_i32_10] : memref<16x32xf32, #tpu.memory_space<any>> -> memref<8x32xf32, #tpu.memory_space<any>>
    %12 = tpu.memref_slice %arg13[%c0_i32] : memref<2x!tpu.dma_semaphore, #tpu.memory_space<semaphore_mem>> -> memref<1x!tpu.dma_semaphore, #tpu.memory_space<semaphore_mem>>
    %13 = tpu.memref_squeeze %12 : memref<1x!tpu.dma_semaphore, #tpu.memory_space<semaphore_mem>> -> memref<!tpu.dma_semaphore, #tpu.memory_space<semaphore_mem>>
    tpu.enqueue_dma source(%arg11 : memref<8x32xf32, #tpu.memory_space<vmem>>) target(%11 : memref<8x32xf32, #tpu.memory_space<any>>) target_semaphore(%13 : memref<!tpu.dma_semaphore, #tpu.memory_space<semaphore_mem>>)
    %c1_i32 = arith.constant 1 : i32
    %c0_i32_11 = arith.constant 0 : i32
    %c0_i32_12 = arith.constant 0 : i32
    %14 = tpu.memref_slice %arg10[%c0_i32_11, %c0_i32_12] : memref<16x32xf32, #tpu.memory_space<any>> -> memref<8x32xf32, #tpu.memory_space<any>>
    %15 = tpu.memref_slice %arg13[%c1_i32] : memref<2x!tpu.dma_semaphore, #tpu.memory_space<semaphore_mem>> -> memref<1x!tpu.dma_semaphore, #tpu.memory_space<semaphore_mem>>
    %16 = tpu.memref_squeeze %15 : memref<1x!tpu.dma_semaphore, #tpu.memory_space<semaphore_mem>> -> memref<!tpu.dma_semaphore, #tpu.memory_space<semaphore_mem>>
    tpu.enqueue_dma source(%arg12 : memref<8x32xf32, #tpu.memory_space<vmem>>) target(%14 : memref<8x32xf32, #tpu.memory_space<any>>) target_semaphore(%16 : memref<!tpu.dma_semaphore, #tpu.memory_space<semaphore_mem>>)
    %17 = vector.extract_strided_slice %6 {offsets = [0, 0], sizes = [8, 8], strides = [1, 1]} : vector<8x32xf32> to vector<8x8xf32>
    %18 = vector.extract_strided_slice %6 {offsets = [0, 8], sizes = [8, 8], strides = [1, 1]} : vector<8x32xf32> to vector<8x8xf32>
    %19 = vector.extract_strided_slice %6 {offsets = [0, 16], sizes = [8, 8], strides = [1, 1]} : vector<8x32xf32> to vector<8x8xf32>
    %20 = vector.extract_strided_slice %6 {offsets = [0, 24], sizes = [8, 8], strides = [1, 1]} : vector<8x32xf32> to vector<8x8xf32>
    %21 = tpu.concatenate %17, %18, %19, %20 in 0 : vector<8x8xf32>, vector<8x8xf32>, vector<8x8xf32>, vector<8x8xf32> -> vector<32x8xf32>
    %22 = vector.extract_strided_slice %7 {offsets = [0, 0], sizes = [8, 8], strides = [1, 1]} : vector<8x32xf32> to vector<8x8xf32>
    %23 = vector.extract_strided_slice %7 {offsets = [0, 8], sizes = [8, 8], strides = [1, 1]} : vector<8x32xf32> to vector<8x8xf32>
    %24 = vector.extract_strided_slice %7 {offsets = [0, 16], sizes = [8, 8], strides = [1, 1]} : vector<8x32xf32> to vector<8x8xf32>
    %25 = vector.extract_strided_slice %7 {offsets = [0, 24], sizes = [8, 8], strides = [1, 1]} : vector<8x32xf32> to vector<8x8xf32>
    %26 = tpu.concatenate %22, %23, %24, %25 in 0 : vector<8x8xf32>, vector<8x8xf32>, vector<8x8xf32>, vector<8x8xf32> -> vector<32x8xf32>
    %27 = vector.extract_strided_slice %8 {offsets = [0, 0], sizes = [8, 8], strides = [1, 1]} : vector<8x32xf32> to vector<8x8xf32>
    %28 = vector.extract_strided_slice %8 {offsets = [0, 8], sizes = [8, 8], strides = [1, 1]} : vector<8x32xf32> to vector<8x8xf32>
    %29 = vector.extract_strided_slice %8 {offsets = [0, 16], sizes = [8, 8], strides = [1, 1]} : vector<8x32xf32> to vector<8x8xf32>
    %30 = vector.extract_strided_slice %8 {offsets = [0, 24], sizes = [8, 8], strides = [1, 1]} : vector<8x32xf32> to vector<8x8xf32>
    %31 = tpu.concatenate %27, %28, %29, %30 in 0 : vector<8x8xf32>, vector<8x8xf32>, vector<8x8xf32>, vector<8x8xf32> -> vector<32x8xf32>
    %c0_13 = arith.constant 0 : index
    %c0_14 = arith.constant 0 : index
    %32 = vector.load %arg5[%c0_13, %c0_14] : memref<4x8xf32, #tpu.memory_space<vmem>>, vector<4x8xf32>
    %33 = vector.extract_strided_slice %32 {offsets = [2, 0], sizes = [1, 8], strides = [1, 1]} : vector<4x8xf32> to vector<1x8xf32>
    %34 = vector.extract_strided_slice %32 {offsets = [3, 0], sizes = [1, 8], strides = [1, 1]} : vector<4x8xf32> to vector<1x8xf32>
    %35 = vector.extract_strided_slice %21 {offsets = [0, 4], sizes = [32, 4], strides = [1, 1]} : vector<32x8xf32> to vector<32x4xf32>
    %cst_15 = arith.constant 0.000000e+00 : f32
    %36 = vector.broadcast %cst_15 : f32 to vector<32x4xf32>
    %37 = arith.subf %36, %35 : vector<32x4xf32>
    %38 = vector.extract_strided_slice %21 {offsets = [0, 0], sizes = [32, 4], strides = [1, 1]} : vector<32x8xf32> to vector<32x4xf32>
    %39 = tpu.concatenate %37, %38 in 1 : vector<32x4xf32>, vector<32x4xf32> -> vector<32x8xf32>
    %40 = vector.broadcast %33 : vector<1x8xf32> to vector<32x8xf32>
    %41 = arith.mulf %21, %40 : vector<32x8xf32>
    %42 = vector.broadcast %34 : vector<1x8xf32> to vector<32x8xf32>
    %43 = arith.mulf %39, %42 : vector<32x8xf32>
    %44 = arith.addf %41, %43 : vector<32x8xf32>
    %45 = vector.extract_strided_slice %32 {offsets = [0, 0], sizes = [1, 8], strides = [1, 1]} : vector<4x8xf32> to vector<1x8xf32>
    %46 = vector.extract_strided_slice %32 {offsets = [1, 0], sizes = [1, 8], strides = [1, 1]} : vector<4x8xf32> to vector<1x8xf32>
    %47 = vector.extract_strided_slice %26 {offsets = [0, 4], sizes = [32, 4], strides = [1, 1]} : vector<32x8xf32> to vector<32x4xf32>
    %cst_16 = arith.constant 0.000000e+00 : f32
    %48 = vector.broadcast %cst_16 : f32 to vector<32x4xf32>
    %49 = arith.subf %48, %47 : vector<32x4xf32>
    %50 = vector.extract_strided_slice %26 {offsets = [0, 0], sizes = [32, 4], strides = [1, 1]} : vector<32x8xf32> to vector<32x4xf32>
    %51 = tpu.concatenate %49, %50 in 1 : vector<32x4xf32>, vector<32x4xf32> -> vector<32x8xf32>
    %52 = vector.broadcast %45 : vector<1x8xf32> to vector<32x8xf32>
    %53 = arith.mulf %26, %52 : vector<32x8xf32>
    %54 = vector.broadcast %46 : vector<1x8xf32> to vector<32x8xf32>
    %55 = arith.mulf %51, %54 : vector<32x8xf32>
    %56 = arith.addf %53, %55 : vector<32x8xf32>
    "tpu.trace_start"() <{level = 10 : i32, message = "id,jd->ij"}> : () -> ()
    %cst_17 = arith.constant dense<0.000000e+00> : vector<32x32xf32>
    %57 = tpu.matmul %44, %56, %cst_17 {dimension_numbers = #tpu.dot_dimension_numbers<[1], [1], [0], [0], [0, 0, 1, 0], [], []>} : vector<32x8xf32>, vector<32x8xf32>, vector<32x32xf32> -> vector<32x32xf32>
    "tpu.trace_stop"() : () -> ()
    %58 = tpu.iota {dimensions = array<i32: 0>} : vector<32x32xi32>
    %59 = tpu.iota {dimensions = array<i32: 1>} : vector<32x32xi32>
    %c7_i32 = arith.constant 7 : i32
    %60 = vector.broadcast %c7_i32 : i32 to vector<32x32xi32>
    %61 = arith.andi %58, %60 : vector<32x32xi32>
    %c7_i32_18 = arith.constant 7 : i32
    %62 = vector.broadcast %c7_i32_18 : i32 to vector<32x32xi32>
    %63 = arith.andi %59, %62 : vector<32x32xi32>
    %64 = arith.cmpi eq, %61, %63 : vector<32x32xi32>
    %cst_19 = arith.constant -1.000000e+30 : f32
    %65 = vector.broadcast %cst_19 : f32 to vector<32x32xf32>
    %66 = arith.select %64, %57, %65 : vector<32x32xi1>, vector<32x32xf32>
    %cst_20 = arith.constant dense<0xFF800000> : vector<32xf32>
    %67 = vector.multi_reduction <maximumf>, %66, %cst_20 [1] : vector<32x32xf32> to vector<32xf32>
    %68 = vector.shape_cast %67 : vector<32xf32> to vector<32x1xf32>
    %69 = vector.broadcast %68 : vector<32x1xf32> to vector<32x32xf32>
    %70 = arith.subf %66, %69 : vector<32x32xf32>
    %71 = math.exp %70 : vector<32x32xf32>
    %cst_21 = arith.constant dense<0.000000e+00> : vector<32xf32>
    %72 = vector.multi_reduction <add>, %71, %cst_21 [1] : vector<32x32xf32> to vector<32xf32>
    %73 = vector.shape_cast %72 : vector<32xf32> to vector<32x1xf32>
    %74 = tpu.reciprocal %73 {approx = true} : vector<32x1xf32> -> vector<32x1xf32>
    %75 = vector.broadcast %74 : vector<32x1xf32> to vector<32x32xf32>
    %76 = arith.mulf %71, %75 : vector<32x32xf32>
    %cst_22 = arith.constant dense<0.000000e+00> : vector<32x8xf32>
    %77 = tpu.matmul %76, %31, %cst_22 {dimension_numbers = #tpu.dot_dimension_numbers<[1], [0], [0], [1], [0, 0, 1, 1], [], []>} : vector<32x32xf32>, vector<32x8xf32>, vector<32x8xf32> -> vector<32x8xf32>
    %78 = tpu.iota {dimensions = array<i32: 0>} : vector<8x32xi32>
    %79 = tpu.iota {dimensions = array<i32: 1>} : vector<8x32xi32>
    %c4_i32 = arith.constant 4 : i32
    %80 = vector.broadcast %c4_i32 : i32 to vector<8x32xi32>
    %81 = arith.muli %78, %80 : vector<8x32xi32>
    %82 = arith.subi %79, %81 : vector<8x32xi32>
    %c0_i32_23 = arith.constant 0 : i32
    %83 = vector.broadcast %c0_i32_23 : i32 to vector<8x32xi32>
    %84 = arith.cmpi eq, %82, %83 : vector<8x32xi32>
    %85 = arith.extui %84 : vector<8x32xi1> to vector<8x32xi32>
    %86 = arith.sitofp %85 : vector<8x32xi32> to vector<8x32xf32>
    %cst_24 = arith.constant dense<0.000000e+00> : vector<8x8xf32>
    %87 = tpu.matmul %86, %77, %cst_24 {dimension_numbers = #tpu.dot_dimension_numbers<[1], [0], [0], [1], [0, 0, 1, 1], [], []>} : vector<8x32xf32>, vector<32x8xf32>, vector<8x8xf32> -> vector<8x8xf32>
    %c1_i32_25 = arith.constant 1 : i32
    %88 = vector.broadcast %c1_i32_25 : i32 to vector<8x32xi32>
    %89 = arith.cmpi eq, %82, %88 : vector<8x32xi32>
    %90 = arith.extui %89 : vector<8x32xi1> to vector<8x32xi32>
    %91 = arith.sitofp %90 : vector<8x32xi32> to vector<8x32xf32>
    %cst_26 = arith.constant dense<0.000000e+00> : vector<8x8xf32>
    %92 = tpu.matmul %91, %77, %cst_26 {dimension_numbers = #tpu.dot_dimension_numbers<[1], [0], [0], [1], [0, 0, 1, 1], [], []>} : vector<8x32xf32>, vector<32x8xf32>, vector<8x8xf32> -> vector<8x8xf32>
    %c2_i32 = arith.constant 2 : i32
    %93 = vector.broadcast %c2_i32 : i32 to vector<8x32xi32>
    %94 = arith.cmpi eq, %82, %93 : vector<8x32xi32>
    %95 = arith.extui %94 : vector<8x32xi1> to vector<8x32xi32>
    %96 = arith.sitofp %95 : vector<8x32xi32> to vector<8x32xf32>
    %cst_27 = arith.constant dense<0.000000e+00> : vector<8x8xf32>
    %97 = tpu.matmul %96, %77, %cst_27 {dimension_numbers = #tpu.dot_dimension_numbers<[1], [0], [0], [1], [0, 0, 1, 1], [], []>} : vector<8x32xf32>, vector<32x8xf32>, vector<8x8xf32> -> vector<8x8xf32>
    %c3_i32 = arith.constant 3 : i32
    %98 = vector.broadcast %c3_i32 : i32 to vector<8x32xi32>
    %99 = arith.cmpi eq, %82, %98 : vector<8x32xi32>
    %100 = arith.extui %99 : vector<8x32xi1> to vector<8x32xi32>
    %101 = arith.sitofp %100 : vector<8x32xi32> to vector<8x32xf32>
    %cst_28 = arith.constant dense<0.000000e+00> : vector<8x8xf32>
    %102 = tpu.matmul %101, %77, %cst_28 {dimension_numbers = #tpu.dot_dimension_numbers<[1], [0], [0], [1], [0, 0, 1, 1], [], []>} : vector<8x32xf32>, vector<32x8xf32>, vector<8x8xf32> -> vector<8x8xf32>
    %103 = tpu.concatenate %87, %92, %97, %102 in 1 : vector<8x8xf32>, vector<8x8xf32>, vector<8x8xf32>, vector<8x8xf32> -> vector<8x32xf32>
    %c0_29 = arith.constant 0 : index
    %c0_30 = arith.constant 0 : index
    %104 = vector.load %arg3[%c0_29, %c0_30] : memref<32x32xf32, #tpu.memory_space<vmem>>, vector<32x32xf32>
    %cst_31 = arith.constant dense<0.000000e+00> : vector<8x32xf32>
    %105 = tpu.matmul %103, %104, %cst_31 {dimension_numbers = #tpu.dot_dimension_numbers<[1], [0], [0], [1], [0, 0, 1, 1], [], []>} : vector<8x32xf32>, vector<32x32xf32>, vector<8x32xf32> -> vector<8x32xf32>
    %c0_32 = arith.constant 0 : index
    %c0_33 = arith.constant 0 : index
    %106 = vector.load %arg4[%c0_32, %c0_33] : memref<1x32xf32, #tpu.memory_space<vmem>>, vector<1x32xf32>
    %107 = vector.broadcast %106 : vector<1x32xf32> to vector<8x32xf32>
    %108 = arith.addf %105, %107 : vector<8x32xf32>
    %c0_34 = arith.constant 0 : index
    %c0_35 = arith.constant 0 : index
    %109 = vector.load %arg8[%c0_34, %c0_35] : memref<8x32xf32, #tpu.memory_space<vmem>>, vector<8x32xf32>
    tpu.vector_store %arg8[%c0_34, %c0_35], %108 {strides = array<i32>} : memref<8x32xf32, #tpu.memory_space<vmem>>, vector<8x32xf32>,
    %c0_i32_36 = arith.constant 0 : i32
    %c0_i32_37 = arith.constant 0 : i32
    %c0_i32_38 = arith.constant 0 : i32
    %110 = tpu.memref_slice %arg9[%c0_i32_37, %c0_i32_38] : memref<16x32xf32, #tpu.memory_space<any>> -> memref<8x32xf32, #tpu.memory_space<any>>
    %111 = tpu.memref_slice %arg13[%c0_i32_36] : memref<2x!tpu.dma_semaphore, #tpu.memory_space<semaphore_mem>> -> memref<1x!tpu.dma_semaphore, #tpu.memory_space<semaphore_mem>>
    %112 = tpu.memref_squeeze %111 : memref<1x!tpu.dma_semaphore, #tpu.memory_space<semaphore_mem>> -> memref<!tpu.dma_semaphore, #tpu.memory_space<semaphore_mem>>
    tpu.wait_dma2 semaphore(%112 : memref<!tpu.dma_semaphore, #tpu.memory_space<semaphore_mem>>) src(%arg11 : memref<8x32xf32, #tpu.memory_space<vmem>>) dst(%110 : memref<8x32xf32, #tpu.memory_space<any>>)
    %c1_i32_39 = arith.constant 1 : i32
    %c0_i32_40 = arith.constant 0 : i32
    %c0_i32_41 = arith.constant 0 : i32
    %113 = tpu.memref_slice %arg10[%c0_i32_40, %c0_i32_41] : memref<16x32xf32, #tpu.memory_space<any>> -> memref<8x32xf32, #tpu.memory_space<any>>
    %114 = tpu.memref_slice %arg13[%c1_i32_39] : memref<2x!tpu.dma_semaphore, #tpu.memory_space<semaphore_mem>> -> memref<1x!tpu.dma_semaphore, #tpu.memory_space<semaphore_mem>>
    %115 = tpu.memref_squeeze %114 : memref<1x!tpu.dma_semaphore, #tpu.memory_space<semaphore_mem>> -> memref<!tpu.dma_semaphore, #tpu.memory_space<semaphore_mem>>
    tpu.wait_dma2 semaphore(%115 : memref<!tpu.dma_semaphore, #tpu.memory_space<semaphore_mem>>) src(%arg12 : memref<8x32xf32, #tpu.memory_space<vmem>>) dst(%113 : memref<8x32xf32, #tpu.memory_space<any>>)
    return
  }
}

</mosaic_0001>

<llo_original>
// kernel: attention_with_cache_forward.1
$region0: #{attention_with_cache_forward.1}
  #allocation0 [shape = 'u32[]', space=smem, size = 0x4, offset = 0x4, fixed_abs, tag = 'smem constant byte address 0x4 - core index']
  #allocation1 [shape = 'u32[72,128]{1,0:T(1,128)}', space=vmem, size = 0x9000, scoped, tag = 'internal scratch']
  #allocation2 [shape = 'f32[8,32]{1,0:T(8,128)}', space=vmem, size = 0x1000, scoped, tag = 'scratch operand']
  #allocation3 [shape = 'f32[8,32]{1,0:T(8,128)}', space=vmem, size = 0x1000, scoped, tag = 'scratch operand']
  #allocation4 [shape = 's32[2]{0}', space=sflag, size = 0x8, scoped, tag = 'scratch operand']
  #allocation7 [shape = 's32[]', space=sflag, size = 0x4, offset = 0, fixed_abs, tag = 'sflag constant byte address 0x0 - dummy sync flag']
  #allocation8 [shape = 's32[]', space=sflag, size = 0x4, offset = 0, fixed_abs, tag = 'sflag constant byte address 0x0 - dummy sync flag']
  %s0 = inlined_call_operand.vmem [shape: f32[8,32], index: 0, kind: input, shape index: {}]
  %s1 = inlined_call_operand.vmem [shape: f32[32,96], index: 1, kind: input, shape index: {}]
  %s2 = inlined_call_operand.vmem [shape: f32[1,96], index: 2, kind: input, shape index: {}]
  %s3 = inlined_call_operand.vmem [shape: f32[32,32], index: 3, kind: input, shape index: {}]
  %s4 = inlined_call_operand.vmem [shape: f32[1,32], index: 4, kind: input, shape index: {}]
  %s5 = inlined_call_operand.vmem [shape: f32[4,8], index: 5, kind: input, shape index: {}]
  %s6 = inlined_call_operand.vmem [shape: f32[16,32], index: 6, kind: input, shape index: {}, may-alias: {6,9}]
  %s7 = inlined_call_operand.vmem [shape: f32[16,32], index: 7, kind: input, shape index: {}, may-alias: {7,10}]
  %s8 = inlined_call_operand.hbm [shape: f32[8,32], index: 8, kind: output, shape index: {0}]
  %s9 = inlined_call_operand.vmem [shape: f32[16,32], index: 9, kind: output, shape index: {1}, may-alias: {6,9}]
  %s10 = inlined_call_operand.vmem [shape: f32[16,32], index: 10, kind: output, shape index: {2}, may-alias: {7,10}]
  %11 = xla_tuple %s8, %s9, %s10
  %s12 = sld [smem:[#allocation0]]
  $region102: #{attention_with_cache_forward.1} parent=0
    _
  %s14 = ssub.s32 1, %s12
  %s15 = scalar_select 0, %s14, %s12
  $region1: #{attention_with_cache_forward.1} parent=0
    #allocation5 [shape = 'u8[4096]{0}', space=vmem, size = 0x1000, scoped, tag = 'output window, operand 0, single buffered']
    #allocation6 [shape = 's32[1]{0}', space=sflag, size = 0x4, scoped, tag = 'scoped memory for attention_with_cache_forward.1']
    %16 = vsyncpa [#allocation6], 0
    // Predicated region
    $region2: #{attention_with_cache_forward.1} parent=1 // pred_check
      _
    $region3: #{attention_with_cache_forward.1} parent=1 // pred_check_branch
      %18 = sbr.rel (0) target = $region5
    $region4: #{attention_with_cache_forward.1} parent=1 // pred_region
      _
    $region5: #{attention_with_cache_forward.1} parent=1 // pred_fallthru
      _
    // Predicated region
    $region6: #{attention_with_cache_forward.1} parent=1 // pred_check
      _
    $region7: #{attention_with_cache_forward.1} parent=1 // pred_check_branch
      %20 = sbr.rel (0) target = $region9
    $region8: #{attention_with_cache_forward.1} parent=1 // pred_region
      _
    $region9: #{attention_with_cache_forward.1} parent=1 // pred_fallthru
      _
    // Predicated region
    $region10: #{attention_with_cache_forward.1} parent=1 // pred_check
      _
    $region11: #{attention_with_cache_forward.1} parent=1 // pred_check_branch
      %22 = sbr.rel (0) target = $region13
    $region12: #{attention_with_cache_forward.1} parent=1 // pred_region
      _
    $region13: #{attention_with_cache_forward.1} parent=1 // pred_fallthru
      _
    // Predicated region
    $region14: #{attention_with_cache_forward.1} parent=1 // pred_check
      _
    $region15: #{attention_with_cache_forward.1} parent=1 // pred_check_branch
      %24 = sbr.rel (0) target = $region17
    $region16: #{attention_with_cache_forward.1} parent=1 // pred_region
      _
    $region17: #{attention_with_cache_forward.1} parent=1 // pred_fallthru
      _
    // Predicated region
    $region18: #{attention_with_cache_forward.1} parent=1 // pred_check
      _
    $region19: #{attention_with_cache_forward.1} parent=1 // pred_check_branch
      %26 = sbr.rel (0) target = $region21
    $region20: #{attention_with_cache_forward.1} parent=1 // pred_region
      _
    $region21: #{attention_with_cache_forward.1} parent=1 // pred_fallthru
      _
    // Predicated region
    $region22: #{attention_with_cache_forward.1} parent=1 // pred_check
      _
    $region23: #{attention_with_cache_forward.1} parent=1 // pred_check_branch
      %28 = sbr.rel (0) target = $region25
    $region24: #{attention_with_cache_forward.1} parent=1 // pred_region
      _
    $region25: #{attention_with_cache_forward.1} parent=1 // pred_fallthru
      _
    %v29 = vld [vmem:[%s0] sm:$0xff]
    %v30 = vld [vmem:[%s1] sm:$0xff]
    %v31 = vld [vmem:[%s1 + $0x8] sm:$0xff]
    %v32 = vld [vmem:[%s1 + $0x10] sm:$0xff]
    %v33 = vld [vmem:[%s1 + $0x18] sm:$0xff]
    %v34 = vld [vmem:[%s2] sm:$0x1]
    %v36 = vperm.slane %v34, 0
    %vm38 = vcmask 261120
    %v40 = vsel %vm38, %v29, 0
    %42 = vmatpush.msra.mxu0 0.0
    %43 = vmatpush.msra.mxu0 0.0
    %44 = vmatpush.msra.mxu0 0.0
    %45 = vmatpush.msra.mxu0 0.0
    %46 = vmatpush.msra.mxu0 0.0
    %47 = vmatpush.msra.mxu0 0.0
    %48 = vmatpush.msra.mxu0 0.0
    %49 = vmatpush.msra.mxu0 0.0
    %50 = vmatpush.msra.mxu0 0.0
    %51 = vmatpush.msra.mxu0 0.0
    %52 = vmatpush.msra.mxu0 0.0
    %53 = vmatpush.msra.mxu0 0.0
    %54 = vmatpush.msra.mxu0 %v33
    %55 = vmatpush.msra.mxu0 %v32
    %56 = vmatpush.msra.mxu0 %v31
    %57 = vmatpush.msra.mxu0 %v30
    %58 = vmatmul.f32.gmra.mxu0 %v40
    %v59 = vpop.f32.mrf.mxu0
    %v60 = vadd.f32 %v36, %v59
    %61 = vdwg.mxu0
    %63 = vrot.lane.b32.xlu0 %v60, 96
    %v64 = vpop.permute.xlu0 %63
    %66 = vst.msk [vmem:[#allocation2] sm:$0xff] %vm38, %v64
    %67 = vrot.lane.b32.xlu0 %v60, 64
    %v68 = vpop.permute.xlu0 %67
    %70 = vst.msk [vmem:[#allocation3] sm:$0xff] %vm38, %v68
    // Predicated region
    $region26: #{attention_with_cache_forward.1} parent=1 // pred_check
      _
    $region27: #{attention_with_cache_forward.1} parent=1 // pred_check_branch
      %72 = sbr.rel (0) target = $region29
    $region28: #{attention_with_cache_forward.1} parent=1 // pred_region
      // Predicated region
      $region41: #{attention_with_cache_forward.1} parent=28 // pred_check
        _
      $region42: #{attention_with_cache_forward.1} parent=28 // pred_check_branch
        %88 = sbr.rel (0) target = $region44
      $region43: #{attention_with_cache_forward.1} parent=28 // pred_region
        loop: start=0, step=1, limit=1
        $region45: #{attention_with_cache_forward.1} parent=43 // loop_pre_header
          _
        $region46: #{attention_with_cache_forward.1} parent=43 // loop_header
          %s90 = sphi 0, %s94
          %p91 = scmp.ge.s32.totalorder %s90, 1
          %s95 = sphi [#allocation2], [#allocation2]
          %s96 = sphi %s9, %s9
        $region47: #{attention_with_cache_forward.1} parent=43 // loop_header_branch
          %93 = sbr.rel (%p91) target = $region51
        $region48: #{attention_with_cache_forward.1} parent=43 // loop_body
          %v97 = vld [vmem:[%s95] sm:$0xff]
          %98 = vst [vmem:[%s96] sm:$0xff] %v97
        $region49: #{attention_with_cache_forward.1} parent=43 // loop_footer
          %s94 = sadd.s32 1, %s90
        $region50: #{attention_with_cache_forward.1} parent=43 // loop_footer_branch
          %89 = sbr.rel target = $region46
        $region51: #{attention_with_cache_forward.1} parent=43 // loop_exit
          _
      $region44: #{attention_with_cache_forward.1} parent=28 // pred_fallthru
        _
      // Predicated region
      $region52: #{attention_with_cache_forward.1} parent=28 // pred_check
        _
      $region53: #{attention_with_cache_forward.1} parent=28 // pred_check_branch
        %100 = sbr.rel target = $region55
      $region54: #{attention_with_cache_forward.1} parent=28 // pred_region
        _
      $region55: #{attention_with_cache_forward.1} parent=28 // pred_fallthru
        _
    $region29: #{attention_with_cache_forward.1} parent=1 // pred_fallthru
      _
    // Predicated region
    $region30: #{attention_with_cache_forward.1} parent=1 // pred_check
      _
    $region31: #{attention_with_cache_forward.1} parent=1 // pred_check_branch
      %74 = sbr.rel target = $region33
    $region32: #{attention_with_cache_forward.1} parent=1 // pred_region
      %s76 = ssub.s32 256, 1
      loop: start=0, step=1, limit=1
      $region34: #{attention_with_cache_forward.1} parent=32 // loop_pre_header
        _
      $region35: #{attention_with_cache_forward.1} parent=32 // loop_header
        %s78 = sphi 0, %s82
        %p79 = scmp.ge.s32.totalorder %s78, 1
        %s83 = sphi [#allocation2], [#allocation2]
        %s84 = sphi %s9, %s9
      $region36: #{attention_with_cache_forward.1} parent=32 // loop_header_branch
        %81 = sbr.rel (%p79) target = $region40
      $region37: #{attention_with_cache_forward.1} parent=32 // loop_body
        %v85 = vld [vmem:[%s83] sm:%s76]
        %86 = vst [vmem:[%s84] sm:%s76] %v85
      $region38: #{attention_with_cache_forward.1} parent=32 // loop_footer
        %s82 = sadd.s32 1, %s78
      $region39: #{attention_with_cache_forward.1} parent=32 // loop_footer_branch
        %77 = sbr.rel target = $region35
      $region40: #{attention_with_cache_forward.1} parent=32 // loop_exit
        _
    $region33: #{attention_with_cache_forward.1} parent=1 // pred_fallthru
      _
    // Predicated region
    $region56: #{attention_with_cache_forward.1} parent=1 // pred_check
      _
    $region57: #{attention_with_cache_forward.1} parent=1 // pred_check_branch
      %103 = sbr.rel (0) target = $region59
    $region58: #{attention_with_cache_forward.1} parent=1 // pred_region
      %104 = vsyncadd [#allocation4], 128
    $region59: #{attention_with_cache_forward.1} parent=1 // pred_fallthru
      _
    %s105 = scalar_lea.sflag [#allocation4], 1
    // Predicated region
    $region60: #{attention_with_cache_forward.1} parent=1 // pred_check
      _
    $region61: #{attention_with_cache_forward.1} parent=1 // pred_check_branch
      %107 = sbr.rel (0) target = $region63
    $region62: #{attention_with_cache_forward.1} parent=1 // pred_region
      // Predicated region
      $region75: #{attention_with_cache_forward.1} parent=62 // pred_check
        _
      $region76: #{attention_with_cache_forward.1} parent=62 // pred_check_branch
        %123 = sbr.rel (0) target = $region78
      $region77: #{attention_with_cache_forward.1} parent=62 // pred_region
        loop: start=0, step=1, limit=1
        $region79: #{attention_with_cache_forward.1} parent=77 // loop_pre_header
          _
        $region80: #{attention_with_cache_forward.1} parent=77 // loop_header
          %s125 = sphi 0, %s129
          %p126 = scmp.ge.s32.totalorder %s125, 1
          %s130 = sphi [#allocation3], [#allocation3]
          %s131 = sphi %s10, %s10
        $region81: #{attention_with_cache_forward.1} parent=77 // loop_header_branch
          %128 = sbr.rel (%p126) target = $region85
        $region82: #{attention_with_cache_forward.1} parent=77 // loop_body
          %v132 = vld [vmem:[%s130] sm:$0xff]
          %133 = vst [vmem:[%s131] sm:$0xff] %v132
        $region83: #{attention_with_cache_forward.1} parent=77 // loop_footer
          %s129 = sadd.s32 1, %s125
        $region84: #{attention_with_cache_forward.1} parent=77 // loop_footer_branch
          %124 = sbr.rel target = $region80
        $region85: #{attention_with_cache_forward.1} parent=77 // loop_exit
          _
      $region78: #{attention_with_cache_forward.1} parent=62 // pred_fallthru
        _
      // Predicated region
      $region86: #{attention_with_cache_forward.1} parent=62 // pred_check
        _
      $region87: #{attention_with_cache_forward.1} parent=62 // pred_check_branch
        %135 = sbr.rel target = $region89
      $region88: #{attention_with_cache_forward.1} parent=62 // pred_region
        _
      $region89: #{attention_with_cache_forward.1} parent=62 // pred_fallthru
        _
    $region63: #{attention_with_cache_forward.1} parent=1 // pred_fallthru
      _
    // Predicated region
    $region64: #{attention_with_cache_forward.1} parent=1 // pred_check
      _
    $region65: #{attention_with_cache_forward.1} parent=1 // pred_check_branch
      %109 = sbr.rel target = $region67
    $region66: #{attention_with_cache_forward.1} parent=1 // pred_region
      %s111 = ssub.s32 256, 1
      loop: start=0, step=1, limit=1
      $region68: #{attention_with_cache_forward.1} parent=66 // loop_pre_header
        _
      $region69: #{attention_with_cache_forward.1} parent=66 // loop_header
        %s113 = sphi 0, %s117
        %p114 = scmp.ge.s32.totalorder %s113, 1
        %s118 = sphi [#allocation3], [#allocation3]
        %s119 = sphi %s10, %s10
      $region70: #{attention_with_cache_forward.1} parent=66 // loop_header_branch
        %116 = sbr.rel (%p114) target = $region74
      $region71: #{attention_with_cache_forward.1} parent=66 // loop_body
        %v120 = vld [vmem:[%s118] sm:%s111]
        %121 = vst [vmem:[%s119] sm:%s111] %v120
      $region72: #{attention_with_cache_forward.1} parent=66 // loop_footer
        %s117 = sadd.s32 1, %s113
      $region73: #{attention_with_cache_forward.1} parent=66 // loop_footer_branch
        %112 = sbr.rel target = $region69
      $region74: #{attention_with_cache_forward.1} parent=66 // loop_exit
        _
    $region67: #{attention_with_cache_forward.1} parent=1 // pred_fallthru
      _
    // Predicated region
    $region90: #{attention_with_cache_forward.1} parent=1 // pred_check
      _
    $region91: #{attention_with_cache_forward.1} parent=1 // pred_check_branch
      %138 = sbr.rel (0) target = $region93
    $region92: #{attention_with_cache_forward.1} parent=1 // pred_region
      %139 = vsyncadd %s105, 128
    $region93: #{attention_with_cache_forward.1} parent=1 // pred_fallthru
      _
    %140 = vrot.lane.b32.xlu0 %v60, 120
    %v141 = vpop.permute.xlu0 %140
    %143 = vrot.lane.b32.xlu0 %v60, 112
    %v144 = vpop.permute.xlu0 %143
    %146 = vrot.lane.b32.xlu0 %v60, 104
    %v147 = vpop.permute.xlu0 %146
    %v149 = vld [vmem:[%s5] sm:$0xf]
    %v150 = vsub.f32 0.0, %v60
    %v151 = vsub.f32 0.0, %v141
    %v152 = vsub.f32 0.0, %v144
    %v153 = vsub.f32 0.0, %v147
    %158 = vrot.lane.b32.xlu0 %v150, 124
    %v159 = vpop.permute.xlu0 %158
    %160 = vrot.lane.b32.xlu0 %v151, 124
    %v161 = vpop.permute.xlu0 %160
    %162 = vrot.lane.b32.xlu0 %v152, 124
    %v163 = vpop.permute.xlu0 %162
    %164 = vrot.lane.b32.xlu0 %v153, 124
    %v165 = vpop.permute.xlu0 %164
    %170 = vrot.lane.b32.xlu0 %v60, 4
    %v171 = vpop.permute.xlu0 %170
    %172 = vrot.lane.b32.xlu0 %v141, 4
    %v173 = vpop.permute.xlu0 %172
    %174 = vrot.lane.b32.xlu0 %v144, 4
    %v175 = vpop.permute.xlu0 %174
    %176 = vrot.lane.b32.xlu0 %v147, 4
    %v177 = vpop.permute.xlu0 %176
    %vm182 = vcmask 31744
    %v183 = vsel %vm182, %v159, %v171
    %v184 = vsel %vm182, %v161, %v173
    %v185 = vsel %vm182, %v163, %v175
    %v186 = vsel %vm182, %v165, %v177
    %v187 = vperm.slane %v149, 2
    %v188 = vmul.f32 %v60, %v187
    %v189 = vmul.f32 %v141, %v187
    %v190 = vmul.f32 %v144, %v187
    %v191 = vmul.f32 %v147, %v187
    %v192 = vperm.slane %v149, 3
    %v193 = vmul.f32 %v183, %v192
    %v194 = vmul.f32 %v184, %v192
    %v195 = vmul.f32 %v185, %v192
    %v196 = vmul.f32 %v186, %v192
    %v197 = vadd.f32 %v188, %v193
    %v198 = vadd.f32 %v189, %v194
    %v199 = vadd.f32 %v190, %v195
    %v200 = vadd.f32 %v191, %v196
    %201 = vrot.lane.b32.xlu0 %v150, 92
    %v202 = vpop.permute.xlu0 %201
    %203 = vrot.lane.b32.xlu0 %v151, 92
    %v204 = vpop.permute.xlu0 %203
    %205 = vrot.lane.b32.xlu0 %v152, 92
    %v206 = vpop.permute.xlu0 %205
    %207 = vrot.lane.b32.xlu0 %v153, 92
    %v208 = vpop.permute.xlu0 %207
    %213 = vrot.lane.b32.xlu0 %v60, 100
    %v214 = vpop.permute.xlu0 %213
    %215 = vrot.lane.b32.xlu0 %v141, 100
    %v216 = vpop.permute.xlu0 %215
    %217 = vrot.lane.b32.xlu0 %v144, 100
    %v218 = vpop.permute.xlu0 %217
    %219 = vrot.lane.b32.xlu0 %v147, 100
    %v220 = vpop.permute.xlu0 %219
    %v225 = vsel %vm182, %v202, %v214
    %v226 = vsel %vm182, %v204, %v216
    %v227 = vsel %vm182, %v206, %v218
    %v228 = vsel %vm182, %v208, %v220
    %v229 = vperm.slane %v149, 0
    %231 = vrot.lane.b32.xlu0 %v229, 32
    %v232 = vpop.permute.xlu0 %231
    %v234 = vmul.f32 %v60, %v232
    %v235 = vmul.f32 %v141, %v232
    %v236 = vmul.f32 %v144, %v232
    %v237 = vmul.f32 %v147, %v232
    %v238 = vperm.slane %v149, 1
    %v239 = vmul.f32 %v225, %v238
    %v240 = vmul.f32 %v226, %v238
    %v241 = vmul.f32 %v227, %v238
    %v242 = vmul.f32 %v228, %v238
    %247 = vrot.lane.b32.xlu0 %v239, 32
    %v248 = vpop.permute.xlu0 %247
    %249 = vrot.lane.b32.xlu0 %v240, 32
    %v250 = vpop.permute.xlu0 %249
    %251 = vrot.lane.b32.xlu0 %v241, 32
    %v252 = vpop.permute.xlu0 %251
    %253 = vrot.lane.b32.xlu0 %v242, 32
    %v254 = vpop.permute.xlu0 %253
    %v259 = vadd.f32 %v234, %v248
    %v260 = vadd.f32 %v235, %v250
    %v261 = vadd.f32 %v236, %v252
    %v262 = vadd.f32 %v237, %v254
    %267 = vrot.lane.b32.xlu0 %v259, 96
    %v268 = vpop.permute.xlu0 %267
    %269 = vrot.lane.b32.xlu0 %v260, 96
    %v270 = vpop.permute.xlu0 %269
    %271 = vrot.lane.b32.xlu0 %v261, 96
    %v272 = vpop.permute.xlu0 %271
    %273 = vrot.lane.b32.xlu0 %v262, 96
    %v274 = vpop.permute.xlu0 %273
    %vm275 = vcmask 64512
    %v277 = vsel %vm275, %v197, 0
    %v280 = vsel %vm275, %v198, 0
    %v283 = vsel %vm275, %v199, 0
    %v286 = vsel %vm275, %v200, 0
    %v288 = vsel %vm275, %v268, 0
    %v290 = vsel %vm275, %v270, 0
    %v292 = vsel %vm275, %v272, 0
    %v294 = vsel %vm275, %v274, 0
    %296 = vmatpush.xpose.msra.mxu0 0.0
    %297 = vmatpush.xpose.msra.mxu0 0.0
    %298 = vmatpush.xpose.msra.mxu0 0.0
    %299 = vmatpush.xpose.msra.mxu0 0.0
    %300 = vmatpush.xpose.msra.mxu0 0.0
    %301 = vmatpush.xpose.msra.mxu0 0.0
    %302 = vmatpush.xpose.msra.mxu0 0.0
    %303 = vmatpush.xpose.msra.mxu0 0.0
    %304 = vmatpush.xpose.msra.mxu0 0.0
    %305 = vmatpush.xpose.msra.mxu0 0.0
    %306 = vmatpush.xpose.msra.mxu0 0.0
    %307 = vmatpush.xpose.msra.mxu0 0.0
    %308 = vmatpush.xpose.msra.mxu0 %v294
    %309 = vmatpush.xpose.msra.mxu0 %v292
    %310 = vmatpush.xpose.msra.mxu0 %v290
    %311 = vmatpush.xpose.msra.mxu0 %v288
    %312 = vmatmul.f32.gmra.mxu0 %v277
    %v313 = vpop.f32.mrf.mxu0
    %v314 = vadd.f32 0.0, %v313
    %315 = vmatmul.f32.gmra.mxu0 %v280
    %v316 = vpop.f32.mrf.mxu0
    %v317 = vadd.f32 0.0, %v316
    %318 = vmatmul.f32.gmra.mxu0 %v283
    %v319 = vpop.f32.mrf.mxu0
    %v320 = vadd.f32 0.0, %v319
    %321 = vmatmul.f32.gmra.mxu0 %v286
    %v322 = vpop.f32.mrf.mxu0
    %v323 = vadd.f32 0.0, %v322
    %324 = vdwg.mxu0
    %v325 = vlaneseq
    %v326 = vshrl.u32 %v325, 7
    %v327 = vadd.s32 %v326, 8
    %v328 = vadd.s32 %v326, 16
    %v329 = vadd.s32 %v326, 24
    %v330 = vlaneseq
    %v331 = vand.u32 %v330, 127
    %v332 = vand.u32 %v326, 7
    %v333 = vand.u32 %v327, 7
    %v334 = vand.u32 %v328, 7
    %v335 = vand.u32 %v329, 7
    %v336 = vand.u32 %v331, 7
    %vm337 = vcmp.eq.s32.totalorder %v332, %v336
    %vm338 = vcmp.eq.s32.totalorder %v333, %v336
    %vm339 = vcmp.eq.s32.totalorder %v334, %v336
    %vm340 = vcmp.eq.s32.totalorder %v335, %v336
    %v341 = vsel %vm337, %v314, -1e+30
    %v342 = vsel %vm338, %v317, -1e+30
    %v343 = vsel %vm339, %v320, -1e+30
    %v344 = vsel %vm340, %v323, -1e+30
    %v345 = vsel %vm38, %v341, -inf
    %346 = vmax.xlane.f32.xlu0 %v345
    %v347 = vpop.xlane.xlu0 %346
    %v348 = vsel %vm38, %v342, -inf
    %349 = vmax.xlane.f32.xlu0 %v348
    %v350 = vpop.xlane.xlu0 %349
    %v351 = vsel %vm38, %v343, -inf
    %352 = vmax.xlane.f32.xlu0 %v351
    %v353 = vpop.xlane.xlu0 %352
    %v354 = vsel %vm38, %v344, -inf
    %355 = vmax.xlane.f32.xlu0 %v354
    %v356 = vpop.xlane.xlu0 %355
    %v357 = vsub.f32 %v341, %v347
    %v358 = vsub.f32 %v342, %v350
    %v359 = vsub.f32 %v343, %v353
    %v360 = vsub.f32 %v344, %v356
    %v361 = vmul.f32 %v357, 1.442695
    %v362 = vpow.pop %v361
    %v363 = vmul.f32 %v358, 1.442695
    %v364 = vpow.pop %v363
    %v365 = vmul.f32 %v359, 1.442695
    %v366 = vpow.pop %v365
    %v367 = vmul.f32 %v360, 1.442695
    %v368 = vpow.pop %v367
    %v369 = vsel %vm38, %v362, 0.0
    %370 = vadd.xlane.f32.xlu0 %v369
    %v371 = vpop.xlane.xlu0 %370
    %v372 = vsel %vm38, %v364, 0.0
    %373 = vadd.xlane.f32.xlu0 %v372
    %v374 = vpop.xlane.xlu0 %373
    %v375 = vsel %vm38, %v366, 0.0
    %376 = vadd.xlane.f32.xlu0 %v375
    %v377 = vpop.xlane.xlu0 %376
    %v378 = vsel %vm38, %v368, 0.0
    %379 = vadd.xlane.f32.xlu0 %v378
    %v380 = vpop.xlane.xlu0 %379
    %v381 = vrcp.pop %v371
    %v382 = vrcp.pop %v374
    %v383 = vrcp.pop %v377
    %v384 = vrcp.pop %v380
    %v385 = vmul.f32 %v362, %v381
    %v386 = vmul.f32 %v364, %v382
    %v387 = vmul.f32 %v366, %v383
    %v388 = vmul.f32 %v368, %v384
    %389 = vrot.lane.b32.xlu0 %v141, 64
    %v390 = vpop.permute.xlu0 %389
    %391 = vrot.lane.b32.xlu0 %v144, 64
    %v392 = vpop.permute.xlu0 %391
    %393 = vrot.lane.b32.xlu0 %v147, 64
    %v394 = vpop.permute.xlu0 %393
    %v399 = vsel %vm38, %v385, 0
    %v402 = vsel %vm38, %v386, 0
    %v405 = vsel %vm38, %v387, 0
    %v408 = vsel %vm38, %v388, 0
    %410 = vmatpush.msra.mxu0 0.0
    %411 = vmatpush.msra.mxu0 0.0
    %412 = vmatpush.msra.mxu0 0.0
    %413 = vmatpush.msra.mxu0 0.0
    %414 = vmatpush.msra.mxu0 0.0
    %415 = vmatpush.msra.mxu0 0.0
    %416 = vmatpush.msra.mxu0 0.0
    %417 = vmatpush.msra.mxu0 0.0
    %418 = vmatpush.msra.mxu0 0.0
    %419 = vmatpush.msra.mxu0 0.0
    %420 = vmatpush.msra.mxu0 0.0
    %421 = vmatpush.msra.mxu0 0.0
    %422 = vmatpush.msra.mxu0 %v394
    %423 = vmatpush.msra.mxu0 %v392
    %424 = vmatpush.msra.mxu0 %v390
    %425 = vmatpush.msra.mxu0 %v68
    %426 = vmatmul.f32.gmra.mxu0 %v399
    %v427 = vpop.f32.mrf.mxu0
    %v428 = vadd.f32 0.0, %v427
    %429 = vmatmul.f32.gmra.mxu0 %v402
    %v430 = vpop.f32.mrf.mxu0
    %v431 = vadd.f32 0.0, %v430
    %432 = vmatmul.f32.gmra.mxu0 %v405
    %v433 = vpop.f32.mrf.mxu0
    %v434 = vadd.f32 0.0, %v433
    %435 = vmatmul.f32.gmra.mxu0 %v408
    %v436 = vpop.f32.mrf.mxu0
    %v437 = vadd.f32 0.0, %v436
    %438 = vdwg.mxu0
    %v439 = vmul.u32 %v326, 4
    %v440 = vsub.s32 %v331, %v439
    %vm441 = vcmp.eq.s32.totalorder %v440, 0
    %v442 = vsel %vm441, 1, 0
    %v443 = vcvt.s32.f32 %v442
    %v445 = vsel %vm38, %v443, 0
    %447 = vmatpush.msra.mxu0 0.0
    %448 = vmatpush.msra.mxu0 0.0
    %449 = vmatpush.msra.mxu0 0.0
    %450 = vmatpush.msra.mxu0 0.0
    %451 = vmatpush.msra.mxu0 0.0
    %452 = vmatpush.msra.mxu0 0.0
    %453 = vmatpush.msra.mxu0 0.0
    %454 = vmatpush.msra.mxu0 0.0
    %455 = vmatpush.msra.mxu0 0.0
    %456 = vmatpush.msra.mxu0 0.0
    %457 = vmatpush.msra.mxu0 0.0
    %458 = vmatpush.msra.mxu0 0.0
    %459 = vmatpush.msra.mxu0 %v437
    %460 = vmatpush.msra.mxu0 %v434
    %461 = vmatpush.msra.mxu0 %v431
    %462 = vmatpush.msra.mxu0 %v428
    %463 = vmatmul.f32.gmra.mxu0 %v445
    %v464 = vpop.f32.mrf.mxu0
    %v465 = vadd.f32 0.0, %v464
    %466 = vdwg.mxu0
    %vm467 = vcmp.eq.s32.totalorder %v440, 1
    %v468 = vsel %vm467, 1, 0
    %v469 = vcvt.s32.f32 %v468
    %v471 = vsel %vm38, %v469, 0
    %473 = vmatpush.msra.mxu0 0.0
    %474 = vmatpush.msra.mxu0 0.0
    %475 = vmatpush.msra.mxu0 0.0
    %476 = vmatpush.msra.mxu0 0.0
    %477 = vmatpush.msra.mxu0 0.0
    %478 = vmatpush.msra.mxu0 0.0
    %479 = vmatpush.msra.mxu0 0.0
    %480 = vmatpush.msra.mxu0 0.0
    %481 = vmatpush.msra.mxu0 0.0
    %482 = vmatpush.msra.mxu0 0.0
    %483 = vmatpush.msra.mxu0 0.0
    %484 = vmatpush.msra.mxu0 0.0
    %485 = vmatpush.msra.mxu0 %v437
    %486 = vmatpush.msra.mxu0 %v434
    %487 = vmatpush.msra.mxu0 %v431
    %488 = vmatpush.msra.mxu0 %v428
    %489 = vmatmul.f32.gmra.mxu0 %v471
    %v490 = vpop.f32.mrf.mxu0
    %v491 = vadd.f32 0.0, %v490
    %492 = vdwg.mxu0
    %vm493 = vcmp.eq.s32.totalorder %v440, 2
    %v494 = vsel %vm493, 1, 0
    %v495 = vcvt.s32.f32 %v494
    %v497 = vsel %vm38, %v495, 0
    %499 = vmatpush.msra.mxu0 0.0
    %500 = vmatpush.msra.mxu0 0.0
    %501 = vmatpush.msra.mxu0 0.0
    %502 = vmatpush.msra.mxu0 0.0
    %503 = vmatpush.msra.mxu0 0.0
    %504 = vmatpush.msra.mxu0 0.0
    %505 = vmatpush.msra.mxu0 0.0
    %506 = vmatpush.msra.mxu0 0.0
    %507 = vmatpush.msra.mxu0 0.0
    %508 = vmatpush.msra.mxu0 0.0
    %509 = vmatpush.msra.mxu0 0.0
    %510 = vmatpush.msra.mxu0 0.0
    %511 = vmatpush.msra.mxu0 %v437
    %512 = vmatpush.msra.mxu0 %v434
    %513 = vmatpush.msra.mxu0 %v431
    %514 = vmatpush.msra.mxu0 %v428
    %515 = vmatmul.f32.gmra.mxu0 %v497
    %v516 = vpop.f32.mrf.mxu0
    %v517 = vadd.f32 0.0, %v516
    %518 = vdwg.mxu0
    %vm519 = vcmp.eq.s32.totalorder %v440, 3
    %v520 = vsel %vm519, 1, 0
    %v521 = vcvt.s32.f32 %v520
    %v523 = vsel %vm38, %v521, 0
    %525 = vmatpush.msra.mxu0 0.0
    %526 = vmatpush.msra.mxu0 0.0
    %527 = vmatpush.msra.mxu0 0.0
    %528 = vmatpush.msra.mxu0 0.0
    %529 = vmatpush.msra.mxu0 0.0
    %530 = vmatpush.msra.mxu0 0.0
    %531 = vmatpush.msra.mxu0 0.0
    %532 = vmatpush.msra.mxu0 0.0
    %533 = vmatpush.msra.mxu0 0.0
    %534 = vmatpush.msra.mxu0 0.0
    %535 = vmatpush.msra.mxu0 0.0
    %536 = vmatpush.msra.mxu0 0.0
    %537 = vmatpush.msra.mxu0 %v437
    %538 = vmatpush.msra.mxu0 %v434
    %539 = vmatpush.msra.mxu0 %v431
    %540 = vmatpush.msra.mxu0 %v428
    %541 = vmatmul.f32.gmra.mxu0 %v523
    %v542 = vpop.f32.mrf.mxu0
    %v543 = vadd.f32 0.0, %v542
    %544 = vdwg.mxu0
    %546 = vrot.lane.b32.xlu0 %v491, 8
    %v547 = vpop.permute.xlu0 %546
    %550 = vrot.lane.b32.xlu0 %v517, 16
    %v551 = vpop.permute.xlu0 %550
    %554 = vrot.lane.b32.xlu0 %v543, 24
    %v555 = vpop.permute.xlu0 %554
    %v557 = vsel %vm275, %v465, %v547
    %vm558 = vcmask 130048
    %v559 = vsel %vm558, %v557, %v551
    %vm560 = vcmask 195584
    %v561 = vsel %vm560, %v559, %v555
    %v562 = vld [vmem:[%s3] sm:$0xff]
    %v563 = vld [vmem:[%s3 + $0x8] sm:$0xff]
    %v564 = vld [vmem:[%s3 + $0x10] sm:$0xff]
    %v565 = vld [vmem:[%s3 + $0x18] sm:$0xff]
    %v566 = vld [vmem:[%s4] sm:$0x1]
    %v568 = vperm.slane %v566, 0
    %v571 = vsel %vm38, %v561, 0
    %573 = vmatpush.msra.mxu0 0.0
    %574 = vmatpush.msra.mxu0 0.0
    %575 = vmatpush.msra.mxu0 0.0
    %576 = vmatpush.msra.mxu0 0.0
    %577 = vmatpush.msra.mxu0 0.0
    %578 = vmatpush.msra.mxu0 0.0
    %579 = vmatpush.msra.mxu0 0.0
    %580 = vmatpush.msra.mxu0 0.0
    %581 = vmatpush.msra.mxu0 0.0
    %582 = vmatpush.msra.mxu0 0.0
    %583 = vmatpush.msra.mxu0 0.0
    %584 = vmatpush.msra.mxu0 0.0
    %585 = vmatpush.msra.mxu0 %v565
    %586 = vmatpush.msra.mxu0 %v564
    %587 = vmatpush.msra.mxu0 %v563
    %588 = vmatpush.msra.mxu0 %v562
    %589 = vmatmul.f32.gmra.mxu0 %v571
    %v590 = vpop.f32.mrf.mxu0
    %v591 = vadd.f32 %v568, %v590
    %592 = vdwg.mxu0
    %593 = vst.msk [vmem:[#allocation5] sm:$0xff] %vm38, %v591
    %s594 = smul.u32 8, 1
    %s595 = sshll.u32 %s594, 4
    %596 = dma.done [#allocation4], %s595
    %s597 = sshll.u32 %s594, 4
    %598 = dma.done %s105, %s597
    // Predicated region
    $region94: #{attention_with_cache_forward.1} parent=1 // pred_check
      _
    $region95: #{attention_with_cache_forward.1} parent=1 // pred_check_branch
      %600 = sbr.rel (0) target = $region97
    $region96: #{attention_with_cache_forward.1} parent=1 // pred_region
      %602 = vsyncadd [#allocation6], 0
      %s604 = sshll.u32 [#allocation5], 4
      %s605 = int_to_ptr.vmem [resolvable:$true] %s604
      %s606 = sshll.u32 %s8, 4
      %s607 = int_to_ptr.hbm [resolvable:$true] %s606
      %609 = dma.vmem_to_hbm [thread:$0]  %s605, 128, %s607, [#allocation6]
    $region97: #{attention_with_cache_forward.1} parent=1 // pred_fallthru
      _
    // Predicated region
    $region98: #{attention_with_cache_forward.1} parent=1 // pred_check
      _
    $region99: #{attention_with_cache_forward.1} parent=1 // pred_check_branch
      %611 = sbr.rel (0) target = $region101
    $region100: #{attention_with_cache_forward.1} parent=1 // pred_region
      %613 = dma.done [#allocation6], 128
    $region101: #{attention_with_cache_forward.1} parent=1 // pred_fallthru
      _
    %614 = vsyncpa [#allocation6], 1
  %615 = vsyncmov [#allocation4]
  %s616 = vpop.sfrf %615
  %p617 = scmp.eq.s32.totalorder %s616, 0
  %p618 = pneg %p617
  %620 = shalt.err (%p618)
  %s621 = scalar_lea.sflag [#allocation4], 1
  %622 = vsyncmov %s621
  %s623 = vpop.sfrf %622
  %p624 = scmp.eq.s32.totalorder %s623, 0
  %p625 = pneg %p624
  %627 = shalt.err (%p625)

</llo_original>
